<compile_context>
chip_gen: v6e
topology: v6e:2x2x1
jax: 0.10.0
libtpu: 0.0.40
codegen_flags: <defaults>
</compile_context>

<pallas_src>
import functools

import jax
import jax.numpy as jnp
from jax.experimental import pallas as pl
from jax.experimental.pallas import tpu as pltpu


def _h_swish(x):
    return x * jnp.clip(x + 3.0, 0.0, 6.0) * (1.0 / 6.0)


def _h_sigmoid(x):
    return jnp.clip(x + 3.0, 0.0, 6.0) * (1.0 / 6.0)


def _pslab_layout(C, cr):
    """Column layout of the packed per-hidden-channel f32 parameter slab (Chid, K)."""
    off, i = {}, 0
    for name, width in (("wdw", 9), ("b1", 1), ("b2", 1), ("fc2w", cr),
                        ("fc2b", 1), ("w1", C), ("w3t", C), ("b3", 1)):
        off[name] = (i, i + width)
        i += width
    return off, i


def _lff_kernel(H, W, C, cr, bt, x_ref, p_ref, q_ref, o_ref):
    HW = H * W
    f32 = jnp.float32

    # ---- unpack packed parameter slabs (tiny static slices, once per grid step) ------
    P = p_ref[...]                                       # (Chid, K) f32
    off, _ = _pslab_layout(C, cr)

    def col(name):
        lo, hi = off[name]
        return P[:, lo:hi]

    wdw = col("wdw")                                     # (Chid, 9)  BN2 scale folded in
    b1 = col("b1")                                       # (Chid, 1)
    b2 = col("b2")                                       # (Chid, 1)
    fc2w = col("fc2w")                                   # (Chid, cr)
    fc2b = col("fc2b")                                   # (Chid, 1)
    w1b = col("w1").astype(jnp.bfloat16)                 # (Chid, C)  BN1 scale folded; MXU lhs
    w3t = col("w3t")                                     # (Chid, C)  BN3 scale folded, transposed;
                                                         #            kept f32 so the SE fold is one rounding
    b3 = col("b3")[:C, :]                                # (C, 1)
    Q = q_ref[...]                                       # (cr, Chid + 1) f32
    nq = Q.shape[1]
    fc1w = Q[:, : nq - 1]                                # (cr, Chid)
    fc1b = Q[:, nq - 1:]                                 # (cr, 1)

    # ---- depthwise boundary masks, hoisted out of the tap loop & shared over bt ------
    pos = jax.lax.broadcasted_iota(jnp.int32, (1, HW), 1)
    px = pos % W
    m_l = px >= 1                    # left neighbour stays inside the row
    m_r = px <= W - 2                # right neighbour stays inside the row
    m_t = pos >= W                   # py >= 1     (no wrap from the bottom row)
    m_b = pos < (H - 1) * W          # py <= H - 2 (no wrap from the top row)

    # ---- per-image pipeline, unrolled over the small batch tile -----------------------
    for b in range(bt):
        # (C, HW): channels on sublanes, flattened spatial on lanes (lane-dense stores).
        x = x_ref[b].astype(f32)

        # 1x1 expansion conv (MXU bf16 / f32 accum); BN1 scale folded -> bias + h_swish only.
        h = jnp.dot(w1b, x.astype(jnp.bfloat16),
                    preferred_element_type=f32) + b1               # (Chid, HW)
        h = _h_swish(h)

        # Depthwise 3x3 (stride 1, pad 1, groups=Chid), separable in shifts:
        # 2 horizontal rolls + 2 vertical rolls, 4 masked selects, 9 FMAs.
        gL = jnp.where(m_l, pltpu.roll(h, shift=1, axis=1), 0.0)        # h[p-1]
        gR = jnp.where(m_r, pltpu.roll(h, shift=HW - 1, axis=1), 0.0)   # h[p+1]
        row_t = wdw[:, 0:1] * gL + wdw[:, 1:2] * h + wdw[:, 2:3] * gR   # kernel row ky=0
        row_m = wdw[:, 3:4] * gL + wdw[:, 4:5] * h + wdw[:, 5:6] * gR   # kernel row ky=1
        row_b = wdw[:, 6:7] * gL + wdw[:, 7:8] * h + wdw[:, 8:9] * gR   # kernel row ky=2
        acc = row_m
        acc = acc + jnp.where(m_t, pltpu.roll(row_t, shift=W, axis=1), 0.0)
        acc = acc + jnp.where(m_b, pltpu.roll(row_b, shift=HW - W, axis=1), 0.0)
        # BN2 scale folded into wdw -> bias + h_swish epilogue (single pass).
        h2 = _h_swish(acc + b2)                                          # (Chid, HW)

        # SE: global average pool -> fc -> ReLU -> fc -> h_sigmoid (all f32, tiny).
        y = jnp.mean(h2, axis=1, keepdims=True)                          # (Chid, 1)
        z = jnp.dot(fc1w, y, preferred_element_type=f32) + fc1b          # (cr, 1)
        z = jnp.maximum(z, 0.0)
        z = jnp.dot(fc2w, z, preferred_element_type=f32) + fc2b          # (Chid, 1)
        z = _h_sigmoid(z)

        # Fold the SE gate into the projection-weight columns ((Chid, C) multiply)
        # instead of scaling the (Chid, HW) activation.
        w3s = (w3t * z).astype(jnp.bfloat16)                             # (Chid, C)

        # 1x1 projection conv + folded BN3 as a lhs-transposed contraction (dim0/dim0),
        # then bias and residual add in f32.
        h3 = jax.lax.dot_general(
            w3s, h2.astype(jnp.bfloat16),
            dimension_numbers=(((0,), (0,)), ((), ())),
            preferred_element_type=f32) + b3                             # (C, HW)

        o_ref[b] = (x + h3).astype(o_ref.dtype)


def _pick_batch_tile(B, per_image_bytes, vmem_budget_bytes=8 << 20):
    """Amortize per-grid-step overhead but keep >=2 steps when possible (v7x: 2 TCs),
    and stay well inside the smallest (v7x, 64 MiB) VMEM budget."""
    cap = max(1, vmem_budget_bytes // max(per_image_bytes, 1))
    target = B // 2 if B >= 2 else B
    bt = max(1, min(target, cap))
    while B % bt:
        bt -= 1
    return bt


def locality_feed_forward(x_nchw, packed, *, alias_input=False):
    pslab, qslab = packed["pslab"], packed["qslab"]
    B, C, H, W = x_nchw.shape
    HW = H * W
    Chid = pslab.shape[0]
    cr = qslab.shape[0]
    _, K = _pslab_layout(C, cr)
    assert pslab.shape == (Chid, K) and qslab.shape == (cr, Chid + 1)

    x = x_nchw.reshape(B, C, HW)     # free reshape - no NCHW<->NHWC transposes

    # Rough per-image footprint of live f32 intermediates (h/gL/gR/rows/acc/h2 + x/h3/out).
    per_img = (6 * Chid + 3 * C) * HW * 4
    bt = _pick_batch_tile(B, per_img)
    grid = (B // bt,)

    kwargs = {}
    if alias_input:
        # Optional: reuse x's HBM buffer for the output (caller must not need x afterwards).
        kwargs["input_output_aliases"] = {0: 0}

    out = pl.pallas_call(
        functools.partial(_lff_kernel, H, W, C, cr, bt),
        out_shape=jax.ShapeDtypeStruct((B, C, HW), x.dtype),
        grid_spec=pltpu.PrefetchScalarGridSpec(
            num_scalar_prefetch=0,
            grid=grid,
            in_specs=[
                pl.BlockSpec((bt, C, HW), lambda b: (b, 0, 0)),
                pl.BlockSpec(pslab.shape, lambda b: (0, 0)),   # grid-invariant param slab
                pl.BlockSpec(qslab.shape, lambda b: (0, 0)),   # grid-invariant SE fc1 slab
            ],
            out_specs=pl.BlockSpec((bt, C, HW), lambda b: (b, 0, 0)),
        ),
        compiler_params=pltpu.CompilerParams(
            dimension_semantics=("parallel",),
        ),
        **kwargs,
    )(x, pslab, qslab)
    return out.reshape(B, C, H, W)


def init_params(key, in_dim=4, expand_ratio=4.0, reduction=4):
    """Deterministic synthetic weights in the PyTorch module's natural layout."""
    hidden = int(in_dim * expand_ratio)
    cr = hidden // reduction
    ks = jax.random.split(key, 20)

    def bn(kg, kb, km, kv, c):
        return dict(
            gamma=1.0 + 0.1 * jax.random.normal(kg, (c,)),
            beta=0.1 * jax.random.normal(kb, (c,)),
            mean=0.1 * jax.random.normal(km, (c,)),
            var=jnp.abs(jax.random.normal(kv, (c,))) * 0.1 + 0.5,
        )

    return dict(
        # Conv2d(in_dim, hidden, 1, bias=False): (hidden, in_dim, 1, 1) -> (hidden, in_dim)
        w1=0.2 * jax.random.normal(ks[12], (hidden, in_dim)),
        bn1=bn(ks[0], ks[1], ks[2], ks[3], hidden),
        # depthwise Conv2d(hidden, hidden, 3, groups=hidden): (hidden, 1, 3, 3) -> (hidden, 9), tap = ky*3+kx
        wdw=0.2 * jax.random.normal(ks[13], (hidden, 9)),
        bn2=bn(ks[4], ks[5], ks[6], ks[7], hidden),
        # SE: Linear(hidden, hidden//r) / Linear(hidden//r, hidden)
        fc1w=0.2 * jax.random.normal(ks[14], (cr, hidden)),
        fc1b=0.1 * jax.random.normal(ks[15], (cr,)),
        fc2w=0.2 * jax.random.normal(ks[16], (hidden, cr)),
        fc2b=0.1 * jax.random.normal(ks[17], (hidden,)),
        # Conv2d(hidden, out_dim, 1, bias=False): (out_dim, hidden, 1, 1) -> (out_dim, hidden)
        w3=0.2 * jax.random.normal(ks[18], (in_dim, hidden)),
        bn3=bn(ks[8], ks[9], ks[10], ks[11], in_dim),
    )


def pack_params(raw, eps=1e-5):
    """Host-side, one-time BN fold + operand packing (all folds in f32)."""
    def fold(b):
        scale = b["gamma"] / jnp.sqrt(b["var"] + eps)
        bias = b["beta"] - b["mean"] * scale
        return scale, bias

    s1, b1 = fold(raw["bn1"])
    s2, b2 = fold(raw["bn2"])
    s3, b3 = fold(raw["bn3"])

    hidden, C = raw["w1"].shape
    cr = raw["fc1w"].shape[0]

    blocks = {
        "wdw": raw["wdw"] * s2[:, None],          # BN2 scale folded into depthwise taps
        "b1": b1[:, None],
        "b2": b2[:, None],
        "fc2w": raw["fc2w"],
        "fc2b": raw["fc2b"][:, None],
        "w1": raw["w1"] * s1[:, None],            # BN1 scale folded into expansion weight
        "w3t": (raw["w3"] * s3[:, None]).T,       # BN3 scale folded, transposed (Chid, C)
        "b3": b3[:, None],                        # (C, 1), zero-padded to Chid rows below
    }
    off, K = _pslab_layout(C, cr)
    pslab = jnp.zeros((hidden, K), jnp.float32)
    for name, (lo, hi) in off.items():
        blk = jnp.asarray(blocks[name], jnp.float32)
        pslab = pslab.at[: blk.shape[0], lo:hi].set(blk)

    qslab = jnp.concatenate(
        [raw["fc1w"], raw["fc1b"][:, None]], axis=1).astype(jnp.float32)   # (cr, hidden+1)
    return dict(pslab=pslab, qslab=qslab)


if __name__ == "__main__":
    key = jax.random.PRNGKey(0)
    kx, kp = jax.random.split(key)

    B, C, H, W = 2, 4, 16, 16            # in_dim = out_dim = 4, hidden = 16
    x = jax.random.normal(kx, (B, C, H, W), dtype=jnp.float32)   # NCHW like PyTorch
    packed = pack_params(init_params(kp, in_dim=C, expand_ratio=4.0, reduction=4))

    out = locality_feed_forward(x, packed)
    jax.block_until_ready(out)
    assert out.shape == (B, C, H, W) and out.dtype == jnp.float32
    print("KERNEL_OK")
</pallas_src>

<mosaic_0001>
module attributes {stable_mosaic.version = 11 : i64} {
  func.func @_lff_kernel(%arg0: i32, %arg1: memref<1x4x256xf32, #tpu.memory_space<vmem>>, %arg2: memref<16x25xf32, #tpu.memory_space<vmem>>, %arg3: memref<4x17xf32, #tpu.memory_space<vmem>>, %arg4: memref<1x4x256xf32, #tpu.memory_space<vmem>>) attributes {dimension_semantics = [#tpu.dimension_semantics<parallel>], iteration_bounds = array<i64: 2>, scalar_prefetch = 0 : i64, scratch_operands = 0 : i64, tpu.core_type = #tpu.core_type<tc>, window_params = [{transform_indices = @transform_0, window_bounds = array<i64: 1, 4, 256>}, {pipeline_mode = #tpu.pipeline_mode<synchronous>, transform_indices = @transform_1, window_bounds = array<i64: 16, 25>}, {pipeline_mode = #tpu.pipeline_mode<synchronous>, transform_indices = @transform_2, window_bounds = array<i64: 4, 17>}, {transform_indices = @transform_3, window_bounds = array<i64: 1, 4, 256>}]} {
    %c0 = arith.constant 0 : index
    %c0_0 = arith.constant 0 : index
    %0 = vector.load %arg2[%c0, %c0_0] : memref<16x25xf32, #tpu.memory_space<vmem>>, vector<16x25xf32>
    %1 = vector.extract_strided_slice %0 {offsets = [0, 0], sizes = [16, 9], strides = [1, 1]} : vector<16x25xf32> to vector<16x9xf32>
    %2 = vector.extract_strided_slice %0 {offsets = [0, 9], sizes = [16, 1], strides = [1, 1]} : vector<16x25xf32> to vector<16x1xf32>
    %3 = vector.extract_strided_slice %0 {offsets = [0, 10], sizes = [16, 1], strides = [1, 1]} : vector<16x25xf32> to vector<16x1xf32>
    %4 = vector.extract_strided_slice %0 {offsets = [0, 11], sizes = [16, 4], strides = [1, 1]} : vector<16x25xf32> to vector<16x4xf32>
    %5 = vector.extract_strided_slice %0 {offsets = [0, 15], sizes = [16, 1], strides = [1, 1]} : vector<16x25xf32> to vector<16x1xf32>
    %6 = vector.extract_strided_slice %0 {offsets = [0, 16], sizes = [16, 4], strides = [1, 1]} : vector<16x25xf32> to vector<16x4xf32>
    %7 = arith.truncf %6 : vector<16x4xf32> to vector<16x4xbf16>
    %8 = vector.extract_strided_slice %0 {offsets = [0, 20], sizes = [16, 4], strides = [1, 1]} : vector<16x25xf32> to vector<16x4xf32>
    %9 = vector.extract_strided_slice %0 {offsets = [0, 24], sizes = [16, 1], strides = [1, 1]} : vector<16x25xf32> to vector<16x1xf32>
    %10 = vector.extract_strided_slice %9 {offsets = [0, 0], sizes = [4, 1], strides = [1, 1]} : vector<16x1xf32> to vector<4x1xf32>
    %c0_1 = arith.constant 0 : index
    %c0_2 = arith.constant 0 : index
    %11 = vector.load %arg3[%c0_1, %c0_2] : memref<4x17xf32, #tpu.memory_space<vmem>>, vector<4x17xf32>
    %12 = vector.extract_strided_slice %11 {offsets = [0, 0], sizes = [4, 16], strides = [1, 1]} : vector<4x17xf32> to vector<4x16xf32>
    %13 = vector.extract_strided_slice %11 {offsets = [0, 16], sizes = [4, 1], strides = [1, 1]} : vector<4x17xf32> to vector<4x1xf32>
    %14 = tpu.iota {dimensions = array<i32: 1>} : vector<1x256xi32>
    %c16_i32 = arith.constant 16 : i32
    %c0_i32 = arith.constant 0 : i32
    %15 = arith.cmpi eq, %c16_i32, %c0_i32 : i32
    %c1_i32 = arith.constant 1 : i32
    %16 = arith.select %15, %c1_i32, %c16_i32 : i32
    %17 = vector.broadcast %16 : i32 to vector<1x256xi32>
    %18 = arith.remsi %14, %17 : vector<1x256xi32>
    %c0_i32_3 = arith.constant 0 : i32
    %19 = vector.broadcast %c0_i32_3 : i32 to vector<1x256xi32>
    %20 = arith.cmpi ne, %18, %19 : vector<1x256xi32>
    %c0_i32_4 = arith.constant 0 : i32
    %21 = vector.broadcast %c0_i32_4 : i32 to vector<1x256xi32>
    %22 = arith.cmpi slt, %18, %21 : vector<1x256xi32>
    %c0_i32_5 = arith.constant 0 : i32
    %23 = arith.cmpi slt, %16, %c0_i32_5 : i32
    %24 = vector.broadcast %23 : i1 to vector<1x256xi1>
    %25 = vector.broadcast %24 : vector<1x256xi1> to vector<1x256xi1>
    %26 = arith.xori %22, %25 : vector<1x256xi1>
    %27 = arith.andi %26, %20 : vector<1x256xi1>
    %28 = vector.broadcast %16 : i32 to vector<1x256xi32>
    %29 = arith.addi %18, %28 : vector<1x256xi32>
    %30 = arith.select %27, %29, %18 : vector<1x256xi1>, vector<1x256xi32>
    %c1_i32_6 = arith.constant 1 : i32
    %31 = vector.broadcast %c1_i32_6 : i32 to vector<1x256xi32>
    %32 = arith.cmpi sge, %30, %31 : vector<1x256xi32>
    %c14_i32 = arith.constant 14 : i32
    %33 = vector.broadcast %c14_i32 : i32 to vector<1x256xi32>
    %34 = arith.cmpi sle, %30, %33 : vector<1x256xi32>
    %c16_i32_7 = arith.constant 16 : i32
    %35 = vector.broadcast %c16_i32_7 : i32 to vector<1x256xi32>
    %36 = arith.cmpi sge, %14, %35 : vector<1x256xi32>
    %c240_i32 = arith.constant 240 : i32
    %37 = vector.broadcast %c240_i32 : i32 to vector<1x256xi32>
    %38 = arith.cmpi slt, %14, %37 : vector<1x256xi32>
    %c0_8 = arith.constant 0 : index
    %c0_9 = arith.constant 0 : index
    %c0_10 = arith.constant 0 : index
    %39 = vector.load %arg1[%c0_8, %c0_9, %c0_10] : memref<1x4x256xf32, #tpu.memory_space<vmem>>, vector<1x4x256xf32>
    %40 = vector.shape_cast %39 : vector<1x4x256xf32> to vector<4x256xf32>
    %41 = arith.truncf %40 : vector<4x256xf32> to vector<4x256xbf16>
    %cst = arith.constant dense<0.000000e+00> : vector<16x256xf32>
    %42 = tpu.matmul %7, %41, %cst {dimension_numbers = #tpu.dot_dimension_numbers<[1], [0], [0], [1], [0, 0, 1, 1], [], []>} : vector<16x4xbf16>, vector<4x256xbf16>, vector<16x256xf32> -> vector<16x256xf32>
    %43 = vector.broadcast %2 : vector<16x1xf32> to vector<16x256xf32>
    %44 = arith.addf %42, %43 : vector<16x256xf32>
    %cst_11 = arith.constant 3.000000e+00 : f32
    %45 = vector.broadcast %cst_11 : f32 to vector<16x256xf32>
    %46 = arith.addf %44, %45 : vector<16x256xf32>
    %cst_12 = arith.constant 0.000000e+00 : f32
    %cst_13 = arith.constant 6.000000e+00 : f32
    %47 = vector.broadcast %cst_12 : f32 to vector<16x256xf32>
    %48 = arith.maximumf %47, %46 : vector<16x256xf32>
    %49 = vector.broadcast %cst_13 : f32 to vector<16x256xf32>
    %50 = arith.minimumf %49, %48 : vector<16x256xf32>
    %51 = arith.mulf %44, %50 : vector<16x256xf32>
    %cst_14 = arith.constant 0.166666672 : f32
    %52 = vector.broadcast %cst_14 : f32 to vector<16x256xf32>
    %53 = arith.mulf %51, %52 : vector<16x256xf32>
    %c1_i32_15 = arith.constant 1 : i32
    %54 = tpu.dynamic_rotate %53 by %c1_i32_15 dim 1 : vector<16x256xf32>, i32 -> vector<16x256xf32>
    %cst_16 = arith.constant 0.000000e+00 : f32
    %55 = vector.shape_cast %32 : vector<1x256xi1> to vector<1x256xi1>
    %56 = vector.broadcast %55 : vector<1x256xi1> to vector<16x256xi1>
    %57 = vector.broadcast %cst_16 : f32 to vector<16x256xf32>
    %58 = arith.select %56, %54, %57 : vector<16x256xi1>, vector<16x256xf32>
    %c255_i32 = arith.constant 255 : i32
    %59 = tpu.dynamic_rotate %53 by %c255_i32 dim 1 : vector<16x256xf32>, i32 -> vector<16x256xf32>
    %cst_17 = arith.constant 0.000000e+00 : f32
    %60 = vector.shape_cast %34 : vector<1x256xi1> to vector<1x256xi1>
    %61 = vector.broadcast %60 : vector<1x256xi1> to vector<16x256xi1>
    %62 = vector.broadcast %cst_17 : f32 to vector<16x256xf32>
    %63 = arith.select %61, %59, %62 : vector<16x256xi1>, vector<16x256xf32>
    %64 = vector.extract_strided_slice %1 {offsets = [0, 0], sizes = [16, 1], strides = [1, 1]} : vector<16x9xf32> to vector<16x1xf32>
    %65 = vector.broadcast %64 : vector<16x1xf32> to vector<16x256xf32>
    %66 = arith.mulf %65, %58 : vector<16x256xf32>
    %67 = vector.extract_strided_slice %1 {offsets = [0, 1], sizes = [16, 1], strides = [1, 1]} : vector<16x9xf32> to vector<16x1xf32>
    %68 = vector.broadcast %67 : vector<16x1xf32> to vector<16x256xf32>
    %69 = arith.mulf %68, %53 : vector<16x256xf32>
    %70 = arith.addf %66, %69 : vector<16x256xf32>
    %71 = vector.extract_strided_slice %1 {offsets = [0, 2], sizes = [16, 1], strides = [1, 1]} : vector<16x9xf32> to vector<16x1xf32>
    %72 = vector.broadcast %71 : vector<16x1xf32> to vector<16x256xf32>
    %73 = arith.mulf %72, %63 : vector<16x256xf32>
    %74 = arith.addf %70, %73 : vector<16x256xf32>
    %75 = vector.extract_strided_slice %1 {offsets = [0, 3], sizes = [16, 1], strides = [1, 1]} : vector<16x9xf32> to vector<16x1xf32>
    %76 = vector.broadcast %75 : vector<16x1xf32> to vector<16x256xf32>
    %77 = arith.mulf %76, %58 : vector<16x256xf32>
    %78 = vector.extract_strided_slice %1 {offsets = [0, 4], sizes = [16, 1], strides = [1, 1]} : vector<16x9xf32> to vector<16x1xf32>
    %79 = vector.broadcast %78 : vector<16x1xf32> to vector<16x256xf32>
    %80 = arith.mulf %79, %53 : vector<16x256xf32>
    %81 = arith.addf %77, %80 : vector<16x256xf32>
    %82 = vector.extract_strided_slice %1 {offsets = [0, 5], sizes = [16, 1], strides = [1, 1]} : vector<16x9xf32> to vector<16x1xf32>
    %83 = vector.broadcast %82 : vector<16x1xf32> to vector<16x256xf32>
    %84 = arith.mulf %83, %63 : vector<16x256xf32>
    %85 = arith.addf %81, %84 : vector<16x256xf32>
    %86 = vector.extract_strided_slice %1 {offsets = [0, 6], sizes = [16, 1], strides = [1, 1]} : vector<16x9xf32> to vector<16x1xf32>
    %87 = vector.broadcast %86 : vector<16x1xf32> to vector<16x256xf32>
    %88 = arith.mulf %87, %58 : vector<16x256xf32>
    %89 = vector.extract_strided_slice %1 {offsets = [0, 7], sizes = [16, 1], strides = [1, 1]} : vector<16x9xf32> to vector<16x1xf32>
    %90 = vector.broadcast %89 : vector<16x1xf32> to vector<16x256xf32>
    %91 = arith.mulf %90, %53 : vector<16x256xf32>
    %92 = arith.addf %88, %91 : vector<16x256xf32>
    %93 = vector.extract_strided_slice %1 {offsets = [0, 8], sizes = [16, 1], strides = [1, 1]} : vector<16x9xf32> to vector<16x1xf32>
    %94 = vector.broadcast %93 : vector<16x1xf32> to vector<16x256xf32>
    %95 = arith.mulf %94, %63 : vector<16x256xf32>
    %96 = arith.addf %92, %95 : vector<16x256xf32>
    %c16_i32_18 = arith.constant 16 : i32
    %97 = tpu.dynamic_rotate %74 by %c16_i32_18 dim 1 : vector<16x256xf32>, i32 -> vector<16x256xf32>
    %cst_19 = arith.constant 0.000000e+00 : f32
    %98 = vector.shape_cast %36 : vector<1x256xi1> to vector<1x256xi1>
    %99 = vector.broadcast %98 : vector<1x256xi1> to vector<16x256xi1>
    %100 = vector.broadcast %cst_19 : f32 to vector<16x256xf32>
    %101 = arith.select %99, %97, %100 : vector<16x256xi1>, vector<16x256xf32>
    %102 = arith.addf %85, %101 : vector<16x256xf32>
    %c240_i32_20 = arith.constant 240 : i32
    %103 = tpu.dynamic_rotate %96 by %c240_i32_20 dim 1 : vector<16x256xf32>, i32 -> vector<16x256xf32>
    %cst_21 = arith.constant 0.000000e+00 : f32
    %104 = vector.shape_cast %38 : vector<1x256xi1> to vector<1x256xi1>
    %105 = vector.broadcast %104 : vector<1x256xi1> to vector<16x256xi1>
    %106 = vector.broadcast %cst_21 : f32 to vector<16x256xf32>
    %107 = arith.select %105, %103, %106 : vector<16x256xi1>, vector<16x256xf32>
    %108 = arith.addf %102, %107 : vector<16x256xf32>
    %109 = vector.broadcast %3 : vector<16x1xf32> to vector<16x256xf32>
    %110 = arith.addf %108, %109 : vector<16x256xf32>
    %cst_22 = arith.constant 3.000000e+00 : f32
    %111 = vector.broadcast %cst_22 : f32 to vector<16x256xf32>
    %112 = arith.addf %110, %111 : vector<16x256xf32>
    %cst_23 = arith.constant 0.000000e+00 : f32
    %cst_24 = arith.constant 6.000000e+00 : f32
    %113 = vector.broadcast %cst_23 : f32 to vector<16x256xf32>
    %114 = arith.maximumf %113, %112 : vector<16x256xf32>
    %115 = vector.broadcast %cst_24 : f32 to vector<16x256xf32>
    %116 = arith.minimumf %115, %114 : vector<16x256xf32>
    %117 = arith.mulf %110, %116 : vector<16x256xf32>
    %cst_25 = arith.constant 0.166666672 : f32
    %118 = vector.broadcast %cst_25 : f32 to vector<16x256xf32>
    %119 = arith.mulf %117, %118 : vector<16x256xf32>
    %cst_26 = arith.constant dense<0.000000e+00> : vector<16xf32>
    %120 = vector.multi_reduction <add>, %119, %cst_26 [1] : vector<16x256xf32> to vector<16xf32>
    %121 = vector.shape_cast %120 : vector<16xf32> to vector<16x1xf32>
    %cst_27 = arith.constant 2.560000e+02 : f32
    %122 = vector.broadcast %cst_27 : f32 to vector<16x1xf32>
    %123 = arith.divf %121, %122 : vector<16x1xf32>
    %cst_28 = arith.constant dense<0.000000e+00> : vector<4x1xf32>
    %124 = tpu.matmul %12, %123, %cst_28 {dimension_numbers = #tpu.dot_dimension_numbers<[1], [0], [0], [1], [0, 0, 1, 1], [], []>} : vector<4x16xf32>, vector<16x1xf32>, vector<4x1xf32> -> vector<4x1xf32>
    %125 = arith.addf %124, %13 : vector<4x1xf32>
    %cst_29 = arith.constant 0.000000e+00 : f32
    %126 = vector.broadcast %cst_29 : f32 to vector<4x1xf32>
    %127 = arith.maximumf %125, %126 : vector<4x1xf32>
    %cst_30 = arith.constant dense<0.000000e+00> : vector<16x1xf32>
    %128 = tpu.matmul %4, %127, %cst_30 {dimension_numbers = #tpu.dot_dimension_numbers<[1], [0], [0], [1], [0, 0, 1, 1], [], []>} : vector<16x4xf32>, vector<4x1xf32>, vector<16x1xf32> -> vector<16x1xf32>
    %129 = arith.addf %128, %5 : vector<16x1xf32>
    %cst_31 = arith.constant 3.000000e+00 : f32
    %130 = vector.broadcast %cst_31 : f32 to vector<16x1xf32>
    %131 = arith.addf %129, %130 : vector<16x1xf32>
    %cst_32 = arith.constant 0.000000e+00 : f32
    %cst_33 = arith.constant 6.000000e+00 : f32
    %132 = vector.broadcast %cst_32 : f32 to vector<16x1xf32>
    %133 = arith.maximumf %132, %131 : vector<16x1xf32>
    %134 = vector.broadcast %cst_33 : f32 to vector<16x1xf32>
    %135 = arith.minimumf %134, %133 : vector<16x1xf32>
    %cst_34 = arith.constant 0.166666672 : f32
    %136 = vector.broadcast %cst_34 : f32 to vector<16x1xf32>
    %137 = arith.mulf %135, %136 : vector<16x1xf32>
    %138 = vector.broadcast %137 : vector<16x1xf32> to vector<16x4xf32>
    %139 = arith.mulf %8, %138 : vector<16x4xf32>
    %140 = arith.truncf %139 : vector<16x4xf32> to vector<16x4xbf16>
    %141 = arith.truncf %119 : vector<16x256xf32> to vector<16x256xbf16>
    %cst_35 = arith.constant dense<0.000000e+00> : vector<4x256xf32>
    %142 = tpu.matmul %140, %141, %cst_35 {dimension_numbers = #tpu.dot_dimension_numbers<[0], [0], [1], [1], [0, 1, 1, 1], [], []>} : vector<16x4xbf16>, vector<16x256xbf16>, vector<4x256xf32> -> vector<4x256xf32>
    %143 = vector.broadcast %10 : vector<4x1xf32> to vector<4x256xf32>
    %144 = arith.addf %142, %143 : vector<4x256xf32>
    %145 = arith.addf %40, %144 : vector<4x256xf32>
    %c0_36 = arith.constant 0 : index
    %c0_37 = arith.constant 0 : index
    %c0_38 = arith.constant 0 : index
    %146 = vector.load %arg4[%c0_36, %c0_37, %c0_38] : memref<1x4x256xf32, #tpu.memory_space<vmem>>, vector<1x4x256xf32>
    %147 = vector.shape_cast %146 : vector<1x4x256xf32> to vector<4x256xf32>
    %148 = vector.shape_cast %145 : vector<4x256xf32> to vector<1x4x256xf32>
    tpu.vector_store %arg4[%c0_36, %c0_37, %c0_38], %148 {strides = array<i32>} : memref<1x4x256xf32, #tpu.memory_space<vmem>>, vector<1x4x256xf32>,
    return
  }
  func.func @transform_0(%arg0: i32) -> (i32, i32, i32) {
    %c0_i32 = arith.constant 0 : i32
    %c0_i32_0 = arith.constant 0 : i32
    %c0_i32_1 = arith.constant 0 : i32
    return %arg0, %c0_i32, %c0_i32_0 : i32, i32, i32
  }
  func.func @transform_1(%arg0: i32) -> (i32, i32) {
    %c0_i32 = arith.constant 0 : i32
    %c0_i32_0 = arith.constant 0 : i32
    %c0_i32_1 = arith.constant 0 : i32
    return %c0_i32, %c0_i32_0 : i32, i32
  }
  func.func @transform_2(%arg0: i32) -> (i32, i32) {
    %c0_i32 = arith.constant 0 : i32
    %c0_i32_0 = arith.constant 0 : i32
    %c0_i32_1 = arith.constant 0 : i32
    return %c0_i32, %c0_i32_0 : i32, i32
  }
  func.func @transform_3(%arg0: i32) -> (i32, i32, i32) {
    %c0_i32 = arith.constant 0 : i32
    %c0_i32_0 = arith.constant 0 : i32
    %c0_i32_1 = arith.constant 0 : i32
    return %arg0, %c0_i32, %c0_i32_0 : i32, i32, i32
  }
}

</mosaic_0001>

<llo_original>
// kernel: tpu_custom_call.1
$region0: #{tpu_custom_call.1}
  #allocation0 [shape = 'u32[]', space=smem, size = 0x4, offset = 0x4, fixed_abs, tag = 'smem constant byte address 0x4 - core index']
  #allocation1 [shape = 'u32[144,128]{1,0:T(1,128)}', space=vmem, size = 0x12000, scoped, tag = 'internal scratch']
  %s0 = inlined_call_operand.hbm [shape: f32[2,4,256], index: 0, kind: input, shape index: {}]
  %s1 = inlined_call_operand.hbm [shape: f32[16,25], index: 1, kind: input, shape index: {}]
  %s2 = inlined_call_operand.hbm [shape: f32[4,17], index: 2, kind: input, shape index: {}]
  %s3 = inlined_call_operand.hbm [shape: f32[2,4,256], index: 3, kind: output, shape index: {}]
  %s4 = sld [smem:[#allocation0]]
  $region57: #{tpu_custom_call.1} parent=0
    _
  %s6 = ssub.s32 1, %s4
  %s7 = scalar_select 0, %s6, %s4
  $region1: #{tpu_custom_call.1} parent=0
    #allocation2 [shape = 'u8[8192]{0}', space=vmem, size = 0x2000, scoped, tag = 'input window, operand 0']
    #allocation3 [shape = 's32[2]{0}', space=sflag, size = 0x8, scoped, tag = 'scoped memory for tpu_custom_call.1']
    #allocation4 [shape = 's32[2]{0}', space=sflag, size = 0x8, scoped, tag = 'scoped memory for tpu_custom_call.1']
    #allocation5 [shape = 'u8[8192]{0}', space=vmem, size = 0x2000, scoped, tag = 'input window, operand 1, single buffered']
    #allocation6 [shape = 's32[1]{0}', space=sflag, size = 0x4, scoped, tag = 'scoped memory for tpu_custom_call.1']
    #allocation7 [shape = 'u8[2048]{0}', space=vmem, size = 0x800, scoped, tag = 'input window, operand 2, single buffered']
    #allocation8 [shape = 'u8[8192]{0}', space=vmem, size = 0x2000, scoped, tag = 'output window, operand 0']
    %8 = vsyncpa [#allocation3], 0
    %s9 = scalar_lea.sflag [#allocation3], 1
    %10 = vsyncpa %s9, 0
    %11 = vsyncpa [#allocation6], 0
    %12 = vsyncpa [#allocation4], 0
    %s13 = scalar_lea.sflag [#allocation4], 1
    %14 = vsyncpa %s13, 0
    loop: start=0, step=1, limit=4
    $region2: #{tpu_custom_call.1} parent=1 // loop_pre_header
      _
    $region3: #{tpu_custom_call.1} parent=1 // loop_header
      %s16 = sphi 0, %s20
      %p17 = scmp.ge.s32.totalorder %s16, 4
      %s26 = sphi 0, %s28
      %s29 = sphi 0, %s26
      %s30 = sphi 0, %s29
      %s46 = sphi 0, %s30
      %s50 = sphi 0, %s50
      %s52 = sphi 0, %s50
      %s53 = sphi 0, %s52
      %s67 = sphi 0, %s53
      %s71 = sphi 0, %s71
      %s73 = sphi 0, %s71
      %s74 = sphi 0, %s73
      %s88 = sphi 0, %s74
      %s94 = sphi 0, %s96
      %s97 = sphi 0, %s94
      %s98 = sphi 0, %s97
      %s114 = sphi 0, %s98
    $region4: #{tpu_custom_call.1} parent=1 // loop_header_branch
      %19 = sbr.rel (%p17) target = $region8
    $region5: #{tpu_custom_call.1} parent=1 // loop_body
      %s21 = ssub.s32 %s16, 1
      %s22 = ssub.s32 %s16, 2
      %s23 = sadd.s32 %s16, 1
      %s24 = ssub.s32 %s16, %s23
      %p25 = scmp.eq.s32.totalorder %s24, 0
      %s27 = sadd.s32 %s26, 1
      %s28 = scalar_select %p25, %s26, %s27
      %p31 = pneg %p25
      %p32 = scmp.eq.s32.totalorder %s16, 1
      %p33 = por %p31, %p32
      %p34 = scmp.ne.s32.totalorder %s26, %s29
      %p35 = scmp.eq.s32.totalorder %s16, 0
      %p36 = por %p34, %p35
      %p37 = scmp.ne.s32.totalorder %s26, %s29
      %p38 = scmp.eq.s32.totalorder %s21, 1
      %p39 = por %p37, %p38
      %p40 = scmp.ne.s32.totalorder %s29, %s30
      %p41 = scmp.eq.s32.totalorder %s21, 0
      %p42 = por %p40, %p41
      %p43 = scmp.ne.s32.totalorder %s29, %s30
      %p44 = scmp.eq.s32.totalorder %s22, 1
      %p45 = por %p43, %p44
      %p47 = scmp.ne.s32.totalorder %s30, %s46
      %p48 = scmp.eq.s32.totalorder %s22, 0
      %p49 = por %p47, %p48
      %s51 = sadd.s32 %s50, 1
      %p54 = scmp.eq.s32.totalorder %s16, 1
      %p55 = scmp.ne.s32.totalorder %s50, %s52
      %p56 = scmp.eq.s32.totalorder %s16, 0
      %p57 = por %p55, %p56
      %p58 = scmp.ne.s32.totalorder %s50, %s52
      %p59 = scmp.eq.s32.totalorder %s21, 1
      %p60 = por %p58, %p59
      %p61 = scmp.ne.s32.totalorder %s52, %s53
      %p62 = scmp.eq.s32.totalorder %s21, 0
      %p63 = por %p61, %p62
      %p64 = scmp.ne.s32.totalorder %s52, %s53
      %p65 = scmp.eq.s32.totalorder %s22, 1
      %p66 = por %p64, %p65
      %p68 = scmp.ne.s32.totalorder %s53, %s67
      %p69 = scmp.eq.s32.totalorder %s22, 0
      %p70 = por %p68, %p69
      %s72 = sadd.s32 %s71, 1
      %p75 = scmp.eq.s32.totalorder %s16, 1
      %p76 = scmp.ne.s32.totalorder %s71, %s73
      %p77 = scmp.eq.s32.totalorder %s16, 0
      %p78 = por %p76, %p77
      %p79 = scmp.ne.s32.totalorder %s71, %s73
      %p80 = scmp.eq.s32.totalorder %s21, 1
      %p81 = por %p79, %p80
      %p82 = scmp.ne.s32.totalorder %s73, %s74
      %p83 = scmp.eq.s32.totalorder %s21, 0
      %p84 = por %p82, %p83
      %p85 = scmp.ne.s32.totalorder %s73, %s74
      %p86 = scmp.eq.s32.totalorder %s22, 1
      %p87 = por %p85, %p86
      %p89 = scmp.ne.s32.totalorder %s74, %s88
      %p90 = scmp.eq.s32.totalorder %s22, 0
      %p91 = por %p89, %p90
      %s92 = ssub.s32 %s16, %s23
      %p93 = scmp.eq.s32.totalorder %s92, 0
      %s95 = sadd.s32 %s94, 1
      %s96 = scalar_select %p93, %s94, %s95
      %p99 = pneg %p93
      %p100 = scmp.eq.s32.totalorder %s16, 1
      %p101 = por %p99, %p100
      %p102 = scmp.ne.s32.totalorder %s94, %s97
      %p103 = scmp.eq.s32.totalorder %s16, 0
      %p104 = por %p102, %p103
      %p105 = scmp.ne.s32.totalorder %s94, %s97
      %p106 = scmp.eq.s32.totalorder %s21, 1
      %p107 = por %p105, %p106
      %p108 = scmp.ne.s32.totalorder %s97, %s98
      %p109 = scmp.eq.s32.totalorder %s21, 0
      %p110 = por %p108, %p109
      %p111 = scmp.ne.s32.totalorder %s97, %s98
      %p112 = scmp.eq.s32.totalorder %s22, 1
      %p113 = por %p111, %p112
      %p115 = scmp.ne.s32.totalorder %s98, %s114
      %p116 = scmp.eq.s32.totalorder %s22, 0
      %p117 = por %p115, %p116
      %p118 = scmp.le.s32.totalorder 1, %s16
      %p119 = scmp.lt.s32.totalorder %s16, 3
      %p120 = pnand %p118, %p119
      %p121 = pneg %p120
      // Predicated region
      $region9: #{tpu_custom_call.1} parent=5 // pred_check
        _
      $region10: #{tpu_custom_call.1} parent=5 // pred_check_branch
        %123 = sbr.rel (%p120) target = $region12
      $region11: #{tpu_custom_call.1} parent=5 // pred_region
        %s124 = ssub.s32 %s16, 1
        // Predicated region
        $region13: #{tpu_custom_call.1} parent=11 // pred_check
          %p125 = pneg %p63
        $region14: #{tpu_custom_call.1} parent=11 // pred_check_branch
          %127 = sbr.rel (%p125) target = $region16
        $region15: #{tpu_custom_call.1} parent=11 // pred_region
          %s129 = ssub.s32 256, 256
          %130 = vsyncadd [#allocation6], %s129
          %s131 = sshll.u32 [#allocation5], 4
          %s132 = int_to_ptr.vmem [resolvable:$true] %s131
          %137 = dma.hbm_to_vmem [thread:$0]  %s1, 256, %s132, [#allocation6], 128, 128, 8
        $region16: #{tpu_custom_call.1} parent=11 // pred_fallthru
          _
        // Predicated region
        $region17: #{tpu_custom_call.1} parent=11 // pred_check
          %p138 = pneg %p84
        $region18: #{tpu_custom_call.1} parent=11 // pred_check_branch
          %140 = sbr.rel (%p138) target = $region20
        $region19: #{tpu_custom_call.1} parent=11 // pred_region
          %s142 = ssub.s32 64, 64
          %143 = vsyncadd [#allocation6], %s142
          %s145 = sshll.u32 [#allocation7], 4
          %s146 = int_to_ptr.vmem [resolvable:$true] %s145
          %148 = dma.hbm_to_vmem [thread:$0]  %s2, 64, %s146, [#allocation6]
        $region20: #{tpu_custom_call.1} parent=11 // pred_fallthru
          _
      $region12: #{tpu_custom_call.1} parent=5 // pred_fallthru
        _
      %p149 = scmp.lt.s32.totalorder %s16, 2
      // Predicated region
      $region21: #{tpu_custom_call.1} parent=5 // pred_check
        %p150 = pneg %p149
      $region22: #{tpu_custom_call.1} parent=5 // pred_check_branch
        %152 = sbr.rel (%p150) target = $region24
      $region23: #{tpu_custom_call.1} parent=5 // pred_region
        // Predicated region
        $region25: #{tpu_custom_call.1} parent=23 // pred_check
          %p153 = pneg %p36
        $region26: #{tpu_custom_call.1} parent=23 // pred_check_branch
          %155 = sbr.rel (%p153) target = $region28
        $region27: #{tpu_custom_call.1} parent=23 // pred_region
          %s156 = sand.u32 %s26, 1
          %s157 = scalar_lea.sflag [#allocation3], %s156
          %s158 = sand.u32 %s26, 1
          %s159 = smul.addr %s158, 8
          %s160 = scalar_lea.vmem [#allocation2], %s159
          %s162 = ssub.s32 128, 128
          %163 = vsyncadd %s157, %s162
          %s164 = smul.addr %s16, 2
          %s165 = smul.addr %s164, 64
          %s166 = scalar_lea.hbm %s0, %s165
          %s168 = sshll.u32 %s160, 4
          %s169 = int_to_ptr.vmem [resolvable:$true] %s168
          %171 = dma.hbm_to_vmem [thread:$0]  %s166, 128, %s169, %s157
        $region28: #{tpu_custom_call.1} parent=23 // pred_fallthru
          _
      $region24: #{tpu_custom_call.1} parent=5 // pred_fallthru
        _
      %p172 = scmp.le.s32.totalorder 1, %s16
      %p173 = scmp.lt.s32.totalorder %s16, 3
      %p174 = pnand %p172, %p173
      %p175 = pneg %p174
      // Predicated region
      $region29: #{tpu_custom_call.1} parent=5 // pred_check
        _
      $region30: #{tpu_custom_call.1} parent=5 // pred_check_branch
        %177 = sbr.rel (%p174) target = $region32
      $region31: #{tpu_custom_call.1} parent=5 // pred_region
        %s178 = ssub.s32 %s16, 1
        %s179 = sand.u32 %s29, 1
        %s180 = scalar_lea.sflag [#allocation3], %s179
        %s181 = sand.u32 %s29, 1
        %s182 = smul.addr %s181, 8
        %s183 = scalar_lea.vmem [#allocation2], %s182
        // Predicated region
        $region33: #{tpu_custom_call.1} parent=31 // pred_check
          %p184 = pneg %p42
        $region34: #{tpu_custom_call.1} parent=31 // pred_check_branch
          %186 = sbr.rel (%p184) target = $region36
        $region35: #{tpu_custom_call.1} parent=31 // pred_region
          %187 = dma.done %s180, 128
        $region36: #{tpu_custom_call.1} parent=31 // pred_fallthru
          _
        // Predicated region
        $region37: #{tpu_custom_call.1} parent=31 // pred_check
          %p188 = pneg %p63
        $region38: #{tpu_custom_call.1} parent=31 // pred_check_branch
          %190 = sbr.rel (%p188) target = $region40
        $region39: #{tpu_custom_call.1} parent=31 // pred_region
          %191 = dma.done [#allocation6], 256
        $region40: #{tpu_custom_call.1} parent=31 // pred_fallthru
          _
        // Predicated region
        $region41: #{tpu_custom_call.1} parent=31 // pred_check
          %p192 = pneg %p84
        $region42: #{tpu_custom_call.1} parent=31 // pred_check_branch
          %194 = sbr.rel (%p192) target = $region44
        $region43: #{tpu_custom_call.1} parent=31 // pred_region
          %195 = dma.done [#allocation6], 64
        $region44: #{tpu_custom_call.1} parent=31 // pred_fallthru
          _
        %s196 = sand.u32 %s29, 1
        %s197 = scalar_lea.sflag [#allocation3], %s196
        %s198 = sand.u32 %s29, 1
        %s199 = smul.addr %s198, 8
        %s200 = scalar_lea.vmem [#allocation2], %s199
        %p201 = pneg %p42
        %p202 = pneg %p39
        %p203 = pneg %p63
        %p204 = pneg %p60
        %p205 = pneg %p84
        %p206 = pneg %p81
        %p207 = pneg %p110
        %p208 = pneg %p107
        %s209 = sand.u32 %s97, 1
        %s210 = scalar_lea.sflag [#allocation4], %s209
        %s211 = sand.u32 %s97, 1
        %s212 = smul.addr %s211, 8
        %s213 = scalar_lea.vmem [#allocation8], %s212
        %v215 = vld [vmem:[#allocation5] sm:$0xff]
        %v216 = vld [vmem:[#allocation5 + $0x8] sm:$0xff]
        %v217 = vpack.c.bf16 %v216, %v215
        %v218 = vld [vmem:[#allocation7] sm:$0xf]
        %v219 = vlaneseq
        %v220 = vand.u32 %v219, 127
        %v221 = vadd.s32 %v220, 128
        %vm222 = vcmp.lt.s32.totalorder %v220, 0
        %v223 = vsub.s32 0, %v220
        %v224 = vsel %vm222, %v223, %v220
        %v225 = vshrl.u32 %v224, 4
        %v226 = vand.u32 %v224, 15
        %v227 = vsub.s32 0, %v226
        %v228 = vsel %vm222, %v227, %v226
        %vm229 = vcmp.lt.s32.totalorder %v221, 0
        %v230 = vsub.s32 0, %v221
        %v231 = vsel %vm229, %v230, %v221
        %v232 = vshrl.u32 %v231, 4
        %v233 = vand.u32 %v231, 15
        %v234 = vsub.s32 0, %v233
        %v235 = vsel %vm229, %v234, %v233
        %vm236 = vcmp.ne.s32.totalorder %v228, 0
        %vm237 = vcmp.ne.s32.totalorder %v235, 0
        %vm238 = vcmp.lt.s32.totalorder %v228, 0
        %vm239 = vcmp.lt.s32.totalorder %v235, 0
        %vm240 = vmand %vm238, %vm236
        %vm241 = vmand %vm239, %vm237
        %v242 = vadd.s32 %v228, 16
        %v243 = vadd.s32 %v235, 16
        %v244 = vsel %vm240, %v242, %v228
        %v245 = vsel %vm241, %v243, %v235
        %vm246 = vcmp.ge.s32.totalorder %v244, 1
        %vm247 = vcmp.ge.s32.totalorder %v245, 1
        %vm248 = vcmp.le.s32.totalorder %v244, 14
        %vm249 = vcmp.le.s32.totalorder %v245, 14
        %vm250 = vcmp.ge.s32.totalorder %v220, 16
        %vm251 = vcmp.ge.s32.totalorder %v221, 16
        %vm252 = vcmp.lt.s32.totalorder %v220, 240
        %vm253 = vcmp.lt.s32.totalorder %v221, 240
        %v254 = vld [vmem:[%s183] sm:$0xff]
        %v256 = vcombine.high %v254, %v254
        %v258 = vpack.c.bf16 %v254, %v254
        %v259 = vpack.c.bf16 %v256, %v256
        %261 = vset.pattern.permute.xlu0 9
        %262 = vperm.xlu0 %261, %v215
        %v263 = vpop.permute.xlu0 %262
        %266 = vset.pattern.permute.xlu0 9
        %267 = vperm.xlu0 %266, %v216
        %v268 = vpop.permute.xlu0 %267
        %271 = vrot.lane.b32.xlu0 %v217, 112
        %v272 = vpop.permute.xlu0 %271
        %vm273 = vcmask 31744
        %v275 = vsel %vm273, %v272, 0
        %vm277 = vcmask 1041408
        %v279 = vsel %vm277, %v258, 0
        %v282 = vsel %vm277, %v259, 0
        %284 = vmatprep.subr.bf16.mxu0 0
        %285 = vmatpush1.bf16.msra.mxu0 0
        %286 = vmatprep.subr.bf16.mxu0 0
        %287 = vmatpush1.bf16.msra.mxu0 0
        %288 = vmatprep.subr.bf16.mxu0 0
        %289 = vmatpush1.bf16.msra.mxu0 0
        %290 = vmatprep.subr.bf16.mxu0 0
        %291 = vmatpush1.bf16.msra.mxu0 0
        %292 = vmatprep.subr.bf16.mxu0 0
        %293 = vmatpush1.bf16.msra.mxu0 0
        %294 = vmatprep.subr.bf16.mxu0 0
        %295 = vmatpush1.bf16.msra.mxu0 0
        %296 = vmatprep.subr.bf16.mxu0 0
        %297 = vmatpush1.bf16.msra.mxu0 0
        %298 = vmatprep.subr.bf16.mxu0 %v282
        %299 = vmatpush1.bf16.msra.mxu0 %v279
        %300 = vmatprep.subr.bf16.mxu0 0
        %301 = vmatpush2.bf16.msra.mxu0 0
        %302 = vmatprep.subr.bf16.mxu0 0
        %303 = vmatpush2.bf16.msra.mxu0 0
        %304 = vmatprep.subr.bf16.mxu0 0
        %305 = vmatpush2.bf16.msra.mxu0 0
        %306 = vmatprep.subr.bf16.mxu0 0
        %307 = vmatpush2.bf16.msra.mxu0 0
        %308 = vmatprep.subr.bf16.mxu0 0
        %309 = vmatpush2.bf16.msra.mxu0 0
        %310 = vmatprep.subr.bf16.mxu0 0
        %311 = vmatpush2.bf16.msra.mxu0 0
        %312 = vmatprep.subr.bf16.mxu0 0
        %313 = vmatpush2.bf16.msra.mxu0 0
        %314 = vmatprep.subr.bf16.mxu0 0
        %315 = vmatpush2.bf16.msra.mxu0 0
        %316 = vmatprep.mubr.bf16.mxu0 0
        %317 = vmatmul.mubr.bf16.gmra.mxu0 %v275
        %v318 = vpop.f32.mrf.mxu0
        %v319 = vadd.f32 %v263, %v318
        %v320 = vpop.f32.mrf.mxu0
        %v321 = vadd.f32 %v263, %v320
        %v322 = vpop.f32.mrf.mxu0
        %v323 = vadd.f32 %v268, %v322
        %v324 = vpop.f32.mrf.mxu0
        %v325 = vadd.f32 %v268, %v324
        %326 = vdwg.mxu0
        %v327 = vadd.f32 %v319, 3.0
        %v328 = vadd.f32 %v321, 3.0
        %v329 = vadd.f32 %v323, 3.0
        %v330 = vadd.f32 %v325, 3.0
        %v331 = vmax.f32 %v327, 0.0
        %v332 = vmax.f32 %v328, 0.0
        %v333 = vmax.f32 %v329, 0.0
        %v334 = vmax.f32 %v330, 0.0
        %v335 = vmin.f32 %v331, 6.0
        %v336 = vmin.f32 %v332, 6.0
        %v337 = vmin.f32 %v333, 6.0
        %v338 = vmin.f32 %v334, 6.0
        %v339 = vmul.f32 %v319, %v335
        %v340 = vmul.f32 %v321, %v336
        %v341 = vmul.f32 %v323, %v337
        %v342 = vmul.f32 %v325, %v338
        %v343 = vmul.f32 %v339, 0.16666667
        %v344 = vmul.f32 %v340, 0.16666667
        %v345 = vmul.f32 %v341, 0.16666667
        %v346 = vmul.f32 %v342, 0.16666667
        %347 = vrot.lane.b32.xlu0 %v343, 1
        %v348 = vpop.permute.xlu0 %347
        %349 = vrot.lane.b32.xlu0 %v345, 1
        %v350 = vpop.permute.xlu0 %349
        %351 = vrot.lane.b32.xlu0 %v344, 1
        %v352 = vpop.permute.xlu0 %351
        %353 = vrot.lane.b32.xlu0 %v346, 1
        %v354 = vpop.permute.xlu0 %353
        %vm355 = vcmp.lt.s32.totalorder %v220, 1
        %v356 = vsel %vm355, %v348, %v352
        %v357 = vsel %vm355, %v350, %v354
        %v358 = vsel %vm355, %v352, %v348
        %v359 = vsel %vm355, %v354, %v350
        %v360 = vsel %vm246, 1, 0
        %v361 = vsel %vm247, 1, 0
        %vm362 = vcmp.eq.s32.totalorder %v360, 1
        %vm363 = vcmp.eq.s32.totalorder %v361, 1
        %v364 = vsel %vm362, %v358, 0.0
        %v365 = vsel %vm363, %v356, 0.0
        %v366 = vsel %vm362, %v359, 0.0
        %v367 = vsel %vm363, %v357, 0.0
        %368 = vrot.lane.b32.xlu0 %v343, 127
        %v369 = vpop.permute.xlu0 %368
        %370 = vrot.lane.b32.xlu0 %v345, 127
        %v371 = vpop.permute.xlu0 %370
        %372 = vrot.lane.b32.xlu0 %v344, 127
        %v373 = vpop.permute.xlu0 %372
        %374 = vrot.lane.b32.xlu0 %v346, 127
        %v375 = vpop.permute.xlu0 %374
        %vm376 = vcmp.lt.s32.totalorder %v220, 127
        %v377 = vsel %vm376, %v369, %v373
        %v378 = vsel %vm376, %v371, %v375
        %v379 = vsel %vm376, %v373, %v369
        %v380 = vsel %vm376, %v375, %v371
        %v381 = vsel %vm248, 1, 0
        %v382 = vsel %vm249, 1, 0
        %vm383 = vcmp.eq.s32.totalorder %v381, 1
        %vm384 = vcmp.eq.s32.totalorder %v382, 1
        %v385 = vsel %vm383, %v377, 0.0
        %v386 = vsel %vm384, %v379, 0.0
        %v387 = vsel %vm383, %v378, 0.0
        %v388 = vsel %vm384, %v380, 0.0
        %389 = vset.pattern.permute.xlu0 0
        %390 = vperm.xlu0 %389, %v215
        %v391 = vpop.permute.xlu0 %390
        %393 = vset.pattern.permute.xlu0 0
        %394 = vperm.xlu0 %393, %v216
        %v395 = vpop.permute.xlu0 %394
        %v397 = vmul.f32 %v391, %v364
        %v398 = vmul.f32 %v391, %v365
        %v399 = vmul.f32 %v395, %v366
        %v400 = vmul.f32 %v395, %v367
        %401 = vset.pattern.permute.xlu0 1
        %402 = vperm.xlu0 %401, %v215
        %v403 = vpop.permute.xlu0 %402
        %405 = vset.pattern.permute.xlu0 1
        %406 = vperm.xlu0 %405, %v216
        %v407 = vpop.permute.xlu0 %406
        %v409 = vmul.f32 %v403, %v343
        %v410 = vmul.f32 %v403, %v344
        %v411 = vmul.f32 %v407, %v345
        %v412 = vmul.f32 %v407, %v346
        %v413 = vadd.f32 %v397, %v409
        %v414 = vadd.f32 %v398, %v410
        %v415 = vadd.f32 %v399, %v411
        %v416 = vadd.f32 %v400, %v412
        %417 = vset.pattern.permute.xlu0 2
        %418 = vperm.xlu0 %417, %v215
        %v419 = vpop.permute.xlu0 %418
        %421 = vset.pattern.permute.xlu0 2
        %422 = vperm.xlu0 %421, %v216
        %v423 = vpop.permute.xlu0 %422
        %v425 = vmul.f32 %v419, %v385
        %v426 = vmul.f32 %v419, %v386
        %v427 = vmul.f32 %v423, %v387
        %v428 = vmul.f32 %v423, %v388
        %v429 = vadd.f32 %v413, %v425
        %v430 = vadd.f32 %v414, %v426
        %v431 = vadd.f32 %v415, %v427
        %v432 = vadd.f32 %v416, %v428
        %433 = vset.pattern.permute.xlu0 3
        %434 = vperm.xlu0 %433, %v215
        %v435 = vpop.permute.xlu0 %434
        %437 = vset.pattern.permute.xlu0 3
        %438 = vperm.xlu0 %437, %v216
        %v439 = vpop.permute.xlu0 %438
        %v441 = vmul.f32 %v435, %v364
        %v442 = vmul.f32 %v435, %v365
        %v443 = vmul.f32 %v439, %v366
        %v444 = vmul.f32 %v439, %v367
        %445 = vset.pattern.permute.xlu0 4
        %446 = vperm.xlu0 %445, %v215
        %v447 = vpop.permute.xlu0 %446
        %449 = vset.pattern.permute.xlu0 4
        %450 = vperm.xlu0 %449, %v216
        %v451 = vpop.permute.xlu0 %450
        %v453 = vmul.f32 %v447, %v343
        %v454 = vmul.f32 %v447, %v344
        %v455 = vmul.f32 %v451, %v345
        %v456 = vmul.f32 %v451, %v346
        %v457 = vadd.f32 %v441, %v453
        %v458 = vadd.f32 %v442, %v454
        %v459 = vadd.f32 %v443, %v455
        %v460 = vadd.f32 %v444, %v456
        %461 = vset.pattern.permute.xlu0 5
        %462 = vperm.xlu0 %461, %v215
        %v463 = vpop.permute.xlu0 %462
        %465 = vset.pattern.permute.xlu0 5
        %466 = vperm.xlu0 %465, %v216
        %v467 = vpop.permute.xlu0 %466
        %v469 = vmul.f32 %v463, %v385
        %v470 = vmul.f32 %v463, %v386
        %v471 = vmul.f32 %v467, %v387
        %v472 = vmul.f32 %v467, %v388
        %v473 = vadd.f32 %v457, %v469
        %v474 = vadd.f32 %v458, %v470
        %v475 = vadd.f32 %v459, %v471
        %v476 = vadd.f32 %v460, %v472
        %477 = vset.pattern.permute.xlu0 6
        %478 = vperm.xlu0 %477, %v215
        %v479 = vpop.permute.xlu0 %478
        %481 = vset.pattern.permute.xlu0 6
        %482 = vperm.xlu0 %481, %v216
        %v483 = vpop.permute.xlu0 %482
        %v485 = vmul.f32 %v479, %v364
        %v486 = vmul.f32 %v479, %v365
        %v487 = vmul.f32 %v483, %v366
        %v488 = vmul.f32 %v483, %v367
        %489 = vset.pattern.permute.xlu0 7
        %490 = vperm.xlu0 %489, %v215
        %v491 = vpop.permute.xlu0 %490
        %493 = vset.pattern.permute.xlu0 7
        %494 = vperm.xlu0 %493, %v216
        %v495 = vpop.permute.xlu0 %494
        %v497 = vmul.f32 %v491, %v343
        %v498 = vmul.f32 %v491, %v344
        %v499 = vmul.f32 %v495, %v345
        %v500 = vmul.f32 %v495, %v346
        %v501 = vadd.f32 %v485, %v497
        %v502 = vadd.f32 %v486, %v498
        %v503 = vadd.f32 %v487, %v499
        %v504 = vadd.f32 %v488, %v500
        %505 = vset.pattern.permute.xlu0 8
        %506 = vperm.xlu0 %505, %v215
        %v507 = vpop.permute.xlu0 %506
        %509 = vset.pattern.permute.xlu0 8
        %510 = vperm.xlu0 %509, %v216
        %v511 = vpop.permute.xlu0 %510
        %v513 = vmul.f32 %v507, %v385
        %v514 = vmul.f32 %v507, %v386
        %v515 = vmul.f32 %v511, %v387
        %v516 = vmul.f32 %v511, %v388
        %v517 = vadd.f32 %v501, %v513
        %v518 = vadd.f32 %v502, %v514
        %v519 = vadd.f32 %v503, %v515
        %v520 = vadd.f32 %v504, %v516
        %521 = vrot.lane.b32.xlu0 %v429, 16
        %v522 = vpop.permute.xlu0 %521
        %523 = vrot.lane.b32.xlu0 %v431, 16
        %v524 = vpop.permute.xlu0 %523
        %525 = vrot.lane.b32.xlu0 %v430, 16
        %v526 = vpop.permute.xlu0 %525
        %527 = vrot.lane.b32.xlu0 %v432, 16
        %v528 = vpop.permute.xlu0 %527
        %vm529 = vcmp.lt.s32.totalorder %v220, 16
        %v530 = vsel %vm529, %v522, %v526
        %v531 = vsel %vm529, %v524, %v528
        %v532 = vsel %vm529, %v526, %v522
        %v533 = vsel %vm529, %v528, %v524
        %v534 = vsel %vm250, 1, 0
        %v535 = vsel %vm251, 1, 0
        %vm536 = vcmp.eq.s32.totalorder %v534, 1
        %vm537 = vcmp.eq.s32.totalorder %v535, 1
        %v538 = vsel %vm536, %v532, 0.0
        %v539 = vsel %vm537, %v530, 0.0
        %v540 = vsel %vm536, %v533, 0.0
        %v541 = vsel %vm537, %v531, 0.0
        %v542 = vadd.f32 %v473, %v538
        %v543 = vadd.f32 %v474, %v539
        %v544 = vadd.f32 %v475, %v540
        %v545 = vadd.f32 %v476, %v541
        %546 = vrot.lane.b32.xlu0 %v517, 112
        %v547 = vpop.permute.xlu0 %546
        %548 = vrot.lane.b32.xlu0 %v519, 112
        %v549 = vpop.permute.xlu0 %548
        %550 = vrot.lane.b32.xlu0 %v518, 112
        %v551 = vpop.permute.xlu0 %550
        %552 = vrot.lane.b32.xlu0 %v520, 112
        %v553 = vpop.permute.xlu0 %552
        %vm554 = vcmp.lt.s32.totalorder %v220, 112
        %v555 = vsel %vm554, %v547, %v551
        %v556 = vsel %vm554, %v549, %v553
        %v557 = vsel %vm554, %v551, %v547
        %v558 = vsel %vm554, %v553, %v549
        %v559 = vsel %vm252, 1, 0
        %v560 = vsel %vm253, 1, 0
        %vm561 = vcmp.eq.s32.totalorder %v559, 1
        %vm562 = vcmp.eq.s32.totalorder %v560, 1
        %v563 = vsel %vm561, %v555, 0.0
        %v564 = vsel %vm562, %v557, 0.0
        %v565 = vsel %vm561, %v556, 0.0
        %v566 = vsel %vm562, %v558, 0.0
        %v567 = vadd.f32 %v542, %v563
        %v568 = vadd.f32 %v543, %v564
        %v569 = vadd.f32 %v544, %v565
        %v570 = vadd.f32 %v545, %v566
        %571 = vset.pattern.permute.xlu0 10
        %572 = vperm.xlu0 %571, %v215
        %v573 = vpop.permute.xlu0 %572
        %575 = vset.pattern.permute.xlu0 10
        %576 = vperm.xlu0 %575, %v216
        %v577 = vpop.permute.xlu0 %576
        %v579 = vadd.f32 %v567, %v573
        %v580 = vadd.f32 %v568, %v573
        %v581 = vadd.f32 %v569, %v577
        %v582 = vadd.f32 %v570, %v577
        %v583 = vadd.f32 %v579, 3.0
        %v584 = vadd.f32 %v580, 3.0
        %v585 = vadd.f32 %v581, 3.0
        %v586 = vadd.f32 %v582, 3.0
        %v587 = vmax.f32 %v583, 0.0
        %v588 = vmax.f32 %v584, 0.0
        %v589 = vmax.f32 %v585, 0.0
        %v590 = vmax.f32 %v586, 0.0
        %v591 = vmin.f32 %v587, 6.0
        %v592 = vmin.f32 %v588, 6.0
        %v593 = vmin.f32 %v589, 6.0
        %v594 = vmin.f32 %v590, 6.0
        %v595 = vmul.f32 %v579, %v591
        %v596 = vmul.f32 %v580, %v592
        %v597 = vmul.f32 %v581, %v593
        %v598 = vmul.f32 %v582, %v594
        %v599 = vmul.f32 %v595, 0.16666667
        %v600 = vmul.f32 %v596, 0.16666667
        %v601 = vmul.f32 %v597, 0.16666667
        %v602 = vmul.f32 %v598, 0.16666667
        %v603 = vadd.f32 %v599, %v600
        %604 = vadd.xlane.f32.xlu0 %v603
        %v605 = vpop.xlane.xlu0 %604
        %v606 = vadd.f32 %v601, %v602
        %607 = vadd.xlane.f32.xlu0 %v606
        %v608 = vpop.xlane.xlu0 %607
        %v609 = vrcp.pop 256.0
        %v610 = vmul.f32 %v605, %v609
        %v611 = vmul.f32 %v608, %v609
        %613 = vrot.lane.b32.xlu0 %v218, 112
        %v614 = vpop.permute.xlu0 %613
        %vm616 = vcmask 130048
        %v617 = vsel %vm616, %v218, 0
        %619 = vmatprep.subr.mxu0 0.0
        %620 = vmatpush1.msra.mxu0 0.0
        %621 = vmatprep.subr.mxu0 0.0
        %622 = vmatpush1.msra.mxu0 0.0
        %623 = vmatprep.subr.mxu0 0.0
        %624 = vmatpush1.msra.mxu0 0.0
        %625 = vmatprep.subr.mxu0 0.0
        %626 = vmatpush1.msra.mxu0 0.0
        %627 = vmatprep.subr.mxu0 0.0
        %628 = vmatpush1.msra.mxu0 0.0
        %629 = vmatprep.subr.mxu0 0.0
        %630 = vmatpush1.msra.mxu0 0.0
        %631 = vmatprep.subr.mxu0 0.0
        %632 = vmatpush1.msra.mxu0 0.0
        %633 = vmatprep.subr.mxu0 0.0
        %634 = vmatpush1.msra.mxu0 0.0
        %635 = vmatprep.subr.mxu0 0.0
        %636 = vmatpush1.msra.mxu0 0.0
        %637 = vmatprep.subr.mxu0 0.0
        %638 = vmatpush1.msra.mxu0 0.0
        %639 = vmatprep.subr.mxu0 0.0
        %640 = vmatpush1.msra.mxu0 0.0
        %641 = vmatprep.subr.mxu0 0.0
        %642 = vmatpush1.msra.mxu0 0.0
        %643 = vmatprep.subr.mxu0 0.0
        %644 = vmatpush1.msra.mxu0 0.0
        %645 = vmatprep.subr.mxu0 0.0
        %646 = vmatpush1.msra.mxu0 0.0
        %647 = vmatprep.subr.mxu0 0.0
        %648 = vmatpush1.msra.mxu0 %v611
        %649 = vmatprep.subr.mxu0 0.0
        %650 = vmatpush1.msra.mxu0 %v610
        %651 = vmatprep.subr.mxu0 0.0
        %652 = vmatpush2.msra.mxu0 0.0
        %653 = vmatprep.subr.mxu0 0.0
        %654 = vmatpush2.msra.mxu0 0.0
        %655 = vmatprep.subr.mxu0 0.0
        %656 = vmatpush2.msra.mxu0 0.0
        %657 = vmatprep.subr.mxu0 0.0
        %658 = vmatpush2.msra.mxu0 0.0
        %659 = vmatprep.subr.mxu0 0.0
        %660 = vmatpush2.msra.mxu0 0.0
        %661 = vmatprep.subr.mxu0 0.0
        %662 = vmatpush2.msra.mxu0 0.0
        %663 = vmatprep.subr.mxu0 0.0
        %664 = vmatpush2.msra.mxu0 0.0
        %665 = vmatprep.subr.mxu0 0.0
        %666 = vmatpush2.msra.mxu0 0.0
        %667 = vmatprep.subr.mxu0 0.0
        %668 = vmatpush2.msra.mxu0 0.0
        %669 = vmatprep.subr.mxu0 0.0
        %670 = vmatpush2.msra.mxu0 0.0
        %671 = vmatprep.subr.mxu0 0.0
        %672 = vmatpush2.msra.mxu0 0.0
        %673 = vmatprep.subr.mxu0 0.0
        %674 = vmatpush2.msra.mxu0 0.0
        %675 = vmatprep.subr.mxu0 0.0
        %676 = vmatpush2.msra.mxu0 0.0
        %677 = vmatprep.subr.mxu0 0.0
        %678 = vmatpush2.msra.mxu0 0.0
        %679 = vmatprep.subr.mxu0 0.0
        %680 = vmatpush2.msra.mxu0 0.0
        %681 = vmatprep.subr.mxu0 0.0
        %682 = vmatpush2.msra.mxu0 0.0
        %683 = vmatprep.mubr.f32.mxu0 0.0
        %684 = vmatmul.mubr.f32.gmra.mxu0 %v617
        %v685 = vpop.f32.mrf.mxu0
        %v686 = vadd.f32 %v614, %v685
        %v687 = vpop.f32.mrf.mxu0
        %688 = vdwg.mxu0
        %v689 = vmax.f32 %v686, 0.0
        %690 = vrot.lane.b32.xlu0 %v215, 117
        %v691 = vpop.permute.xlu0 %690
        %692 = vrot.lane.b32.xlu0 %v216, 117
        %v693 = vpop.permute.xlu0 %692
        %694 = vrot.lane.b32.xlu0 %v215, 113
        %v695 = vpop.permute.xlu0 %694
        %696 = vrot.lane.b32.xlu0 %v216, 113
        %v697 = vpop.permute.xlu0 %696
        %v700 = vsel %vm273, %v691, 0
        %v702 = vsel %vm273, %v693, 0
        %vm704 = vcmask 1043456
        %v706 = vsel %vm704, %v689, 0
        %708 = vmatprep.subr.mxu0 0.0
        %709 = vmatpush1.msra.mxu0 0.0
        %710 = vmatprep.subr.mxu0 0.0
        %711 = vmatpush1.msra.mxu0 0.0
        %712 = vmatprep.subr.mxu0 0.0
        %713 = vmatpush1.msra.mxu0 0.0
        %714 = vmatprep.subr.mxu0 0.0
        %715 = vmatpush1.msra.mxu0 0.0
        %716 = vmatprep.subr.mxu0 0.0
        %717 = vmatpush1.msra.mxu0 0.0
        %718 = vmatprep.subr.mxu0 0.0
        %719 = vmatpush1.msra.mxu0 0.0
        %720 = vmatprep.subr.mxu0 0.0
        %721 = vmatpush1.msra.mxu0 0.0
        %722 = vmatprep.subr.mxu0 0.0
        %723 = vmatpush1.msra.mxu0 0.0
        %724 = vmatprep.subr.mxu0 0.0
        %725 = vmatpush1.msra.mxu0 0.0
        %726 = vmatprep.subr.mxu0 0.0
        %727 = vmatpush1.msra.mxu0 0.0
        %728 = vmatprep.subr.mxu0 0.0
        %729 = vmatpush1.msra.mxu0 0.0
        %730 = vmatprep.subr.mxu0 0.0
        %731 = vmatpush1.msra.mxu0 0.0
        %732 = vmatprep.subr.mxu0 0.0
        %733 = vmatpush1.msra.mxu0 0.0
        %734 = vmatprep.subr.mxu0 0.0
        %735 = vmatpush1.msra.mxu0 0.0
        %736 = vmatprep.subr.mxu0 0.0
        %737 = vmatpush1.msra.mxu0 0.0
        %738 = vmatprep.subr.mxu0 0.0
        %739 = vmatpush1.msra.mxu0 %v706
        %740 = vmatprep.subr.mxu0 0.0
        %741 = vmatpush2.msra.mxu0 0.0
        %742 = vmatprep.subr.mxu0 0.0
        %743 = vmatpush2.msra.mxu0 0.0
        %744 = vmatprep.subr.mxu0 0.0
        %745 = vmatpush2.msra.mxu0 0.0
        %746 = vmatprep.subr.mxu0 0.0
        %747 = vmatpush2.msra.mxu0 0.0
        %748 = vmatprep.subr.mxu0 0.0
        %749 = vmatpush2.msra.mxu0 0.0
        %750 = vmatprep.subr.mxu0 0.0
        %751 = vmatpush2.msra.mxu0 0.0
        %752 = vmatprep.subr.mxu0 0.0
        %753 = vmatpush2.msra.mxu0 0.0
        %754 = vmatprep.subr.mxu0 0.0
        %755 = vmatpush2.msra.mxu0 0.0
        %756 = vmatprep.subr.mxu0 0.0
        %757 = vmatpush2.msra.mxu0 0.0
        %758 = vmatprep.subr.mxu0 0.0
        %759 = vmatpush2.msra.mxu0 0.0
        %760 = vmatprep.subr.mxu0 0.0
        %761 = vmatpush2.msra.mxu0 0.0
        %762 = vmatprep.subr.mxu0 0.0
        %763 = vmatpush2.msra.mxu0 0.0
        %764 = vmatprep.subr.mxu0 0.0
        %765 = vmatpush2.msra.mxu0 0.0
        %766 = vmatprep.subr.mxu0 0.0
        %767 = vmatpush2.msra.mxu0 0.0
        %768 = vmatprep.subr.mxu0 0.0
        %769 = vmatpush2.msra.mxu0 0.0
        %770 = vmatprep.subr.mxu0 0.0
        %771 = vmatpush2.msra.mxu0 0.0
        %772 = vmatprep.mubr.f32.mxu0 0.0
        %773 = vmatmul.mubr.f32.gmra.mxu0 %v700
        %v774 = vpop.f32.mrf.mxu0
        %v775 = vadd.f32 %v695, %v774
        %v776 = vpop.f32.mrf.mxu0
        %777 = vmatprep.mubr.f32.mxu0 0.0
        %778 = vmatmul.mubr.f32.gmra.mxu0 %v702
        %v779 = vpop.f32.mrf.mxu0
        %v780 = vadd.f32 %v697, %v779
        %v781 = vpop.f32.mrf.mxu0
        %782 = vdwg.mxu0
        %v783 = vadd.f32 %v775, 3.0
        %v784 = vadd.f32 %v780, 3.0
        %v785 = vmax.f32 %v783, 0.0
        %v786 = vmax.f32 %v784, 0.0
        %v787 = vmin.f32 %v785, 6.0
        %v788 = vmin.f32 %v786, 6.0
        %v789 = vmul.f32 %v787, 0.16666667
        %v790 = vmul.f32 %v788, 0.16666667
        %792 = vset.pattern.permute.xlu0 0
        %793 = vperm.xlu0 %792, %v789
        %v794 = vpop.permute.xlu0 %793
        %797 = vset.pattern.permute.xlu0 0
        %798 = vperm.xlu0 %797, %v790
        %v799 = vpop.permute.xlu0 %798
        %v801 = vmul.f32 %v215, %v794
        %v802 = vmul.f32 %v216, %v799
        %v803 = vpack.c.bf16 %v802, %v801
        %v804 = vpack.c.bf16 %v601, %v599
        %v805 = vpack.c.bf16 %v602, %v600
        %806 = vset.pattern.permute.xlu0 24
        %807 = vperm.xlu0 %806, %v215
        %v808 = vpop.permute.xlu0 %807
        %811 = vrot.lane.b32.xlu0 %v803, 108
        %v812 = vpop.permute.xlu0 %811
        %814 = vxpose.xlu0.c.b16.start [1/8] %v812, 128
        %815 = vxpose.xlu0.c.b16.cont [2/8] 0, 128
        %816 = vxpose.xlu0.c.b16.cont [3/8] 0, 128
        %817 = vxpose.xlu0.c.b16.cont [4/8] 0, 128
        %818 = vxpose.xlu0.c.b16.cont [5/8] 0, 128
        %819 = vxpose.xlu0.c.b16.cont [6/8] 0, 128
        %820 = vxpose.xlu0.c.b16.cont [7/8] 0, 128
        %821 = vxpose.xlu0.c.b16.end [8/8] 0, 128
        %v822 = vpop.trf.xlu0
        %v823 = vpop.trf.xlu0
        %v824 = vpop.trf.xlu0
        %v825 = vpop.trf.xlu0
        %v826 = vpop.trf.xlu0
        %v827 = vpop.trf.xlu0
        %v828 = vpop.trf.xlu0
        %v829 = vpop.trf.xlu0
        %v831 = vsel %vm616, %v822, 0
        %833 = vmatprep.subr.bf16.mxu0 0
        %834 = vmatpush1.bf16.msra.mxu0 0
        %835 = vmatprep.subr.bf16.mxu0 0
        %836 = vmatpush1.bf16.msra.mxu0 0
        %837 = vmatprep.subr.bf16.mxu0 0
        %838 = vmatpush1.bf16.msra.mxu0 0
        %839 = vmatprep.subr.bf16.mxu0 0
        %840 = vmatpush1.bf16.msra.mxu0 0
        %841 = vmatprep.subr.bf16.mxu0 0
        %842 = vmatpush1.bf16.msra.mxu0 0
        %843 = vmatprep.subr.bf16.mxu0 0
        %844 = vmatpush1.bf16.msra.mxu0 0
        %845 = vmatprep.subr.bf16.mxu0 0
        %846 = vmatpush1.bf16.msra.mxu0 0
        %847 = vmatprep.subr.bf16.mxu0 %v805
        %848 = vmatpush1.bf16.msra.mxu0 %v804
        %849 = vmatprep.subr.bf16.mxu0 0
        %850 = vmatpush2.bf16.msra.mxu0 0
        %851 = vmatprep.subr.bf16.mxu0 0
        %852 = vmatpush2.bf16.msra.mxu0 0
        %853 = vmatprep.subr.bf16.mxu0 0
        %854 = vmatpush2.bf16.msra.mxu0 0
        %855 = vmatprep.subr.bf16.mxu0 0
        %856 = vmatpush2.bf16.msra.mxu0 0
        %857 = vmatprep.subr.bf16.mxu0 0
        %858 = vmatpush2.bf16.msra.mxu0 0
        %859 = vmatprep.subr.bf16.mxu0 0
        %860 = vmatpush2.bf16.msra.mxu0 0
        %861 = vmatprep.subr.bf16.mxu0 0
        %862 = vmatpush2.bf16.msra.mxu0 0
        %863 = vmatprep.subr.bf16.mxu0 0
        %864 = vmatpush2.bf16.msra.mxu0 0
        %865 = vmatprep.mubr.bf16.mxu0 0
        %866 = vmatmul.mubr.bf16.gmra.mxu0 %v831
        %v867 = vpop.f32.mrf.mxu0
        %v868 = vadd.f32 %v808, %v867
        %v869 = vpop.f32.mrf.mxu0
        %v870 = vadd.f32 %v808, %v869
        %v871 = vpop.f32.mrf.mxu0
        %v872 = vpop.f32.mrf.mxu0
        %873 = vdwg.mxu0
        %v876 = vcombine.low %v868, %v870
        %v878 = vadd.f32 %v254, %v876
        %879 = vst [vmem:[%s213] sm:$0xff] %v878
        %s880 = sand.u32 %s97, 1
        %s881 = scalar_lea.sflag [#allocation4], %s880
        %s882 = sand.u32 %s97, 1
        %s883 = smul.addr %s882, 8
        %s884 = scalar_lea.vmem [#allocation8], %s883
        // Predicated region
        $region45: #{tpu_custom_call.1} parent=31 // pred_check
          %p885 = pneg %p107
        $region46: #{tpu_custom_call.1} parent=31 // pred_check_branch
          %887 = sbr.rel (%p885) target = $region48
        $region47: #{tpu_custom_call.1} parent=31 // pred_region
          %s889 = ssub.s32 128, 128
          %890 = vsyncadd %s881, %s889
          %s891 = smul.addr %s21, 2
          %s892 = smul.addr %s891, 64
          %s893 = scalar_lea.hbm %s3, %s892
          %s895 = sshll.u32 %s884, 4
          %s896 = int_to_ptr.vmem [resolvable:$true] %s895
          %898 = dma.vmem_to_hbm [thread:$0]  %s896, 128, %s893, %s881
        $region48: #{tpu_custom_call.1} parent=31 // pred_fallthru
          _
      $region32: #{tpu_custom_call.1} parent=5 // pred_fallthru
        _
      %p899 = scmp.le.s32.totalorder 2, %s16
      // Predicated region
      $region49: #{tpu_custom_call.1} parent=5 // pred_check
        %p900 = pneg %p899
      $region50: #{tpu_custom_call.1} parent=5 // pred_check_branch
        %902 = sbr.rel (%p900) target = $region52
      $region51: #{tpu_custom_call.1} parent=5 // pred_region
        %s903 = ssub.s32 %s16, 2
        // Predicated region
        $region53: #{tpu_custom_call.1} parent=51 // pred_check
          %p904 = pneg %p113
        $region54: #{tpu_custom_call.1} parent=51 // pred_check_branch
          %906 = sbr.rel (%p904) target = $region56
        $region55: #{tpu_custom_call.1} parent=51 // pred_region
          %s907 = sand.u32 %s98, 1
          %s908 = scalar_lea.sflag [#allocation4], %s907
          %s909 = sand.u32 %s98, 1
          %s910 = smul.addr %s909, 8
          %s911 = scalar_lea.vmem [#allocation8], %s910
          %912 = dma.done %s908, 128
        $region56: #{tpu_custom_call.1} parent=51 // pred_fallthru
          _
      $region52: #{tpu_custom_call.1} parent=5 // pred_fallthru
        _
    $region6: #{tpu_custom_call.1} parent=1 // loop_footer
      %s20 = sadd.s32 1, %s16
    $region7: #{tpu_custom_call.1} parent=1 // loop_footer_branch
      %15 = sbr.rel target = $region3
    $region8: #{tpu_custom_call.1} parent=1 // loop_exit
      _
    %913 = vsyncpa [#allocation3], 1
    %s914 = scalar_lea.sflag [#allocation3], 1
    %915 = vsyncpa %s914, 1
    %916 = vsyncpa [#allocation6], 1
    %917 = vsyncpa [#allocation4], 1
    %s918 = scalar_lea.sflag [#allocation4], 1
    %919 = vsyncpa %s918, 1

</llo_original>
